<compile_context>
chip_gen: v6e
topology: v6e:2x2x1
jax: 0.10.0
libtpu: 0.0.40
codegen_flags: <defaults>
</compile_context>

<pallas_src>
import functools

import jax
import jax.numpy as jnp
from jax.experimental import pallas as pl
from jax.experimental.pallas import tpu as pltpu


# ---------------------------------------------------------------------------
# Path 1: fused single-kernel GCN (everything resident in VMEM)
# ---------------------------------------------------------------------------
def _gcn_fused_kernel(a_ref, x_ref, w1_ref, w2_ref, w3_ref, o_ref):
    """out = A @ (relu(A @ (relu((A@X)@W1)) @ W2) @ W3)  (reassociated)."""
    cdt = a_ref.dtype                      # compute dtype (bf16 or f32)
    a = a_ref[...]

    # Layer 1: relu((A @ X) @ W1)   (same FLOPs either association for square X)
    ax = jnp.dot(a, x_ref[...], preferred_element_type=jnp.float32)
    h1 = jnp.maximum(
        jnp.dot(ax.astype(cdt), w1_ref[...], preferred_element_type=jnp.float32),
        0.0)

    # Layer 2: relu(A @ (h1 @ W2))  -- A contracts against Dh (= Din/2), not Din.
    h1w2 = jnp.dot(h1.astype(cdt), w2_ref[...], preferred_element_type=jnp.float32)
    h2 = jnp.maximum(
        jnp.dot(a, h1w2.astype(cdt), preferred_element_type=jnp.float32), 0.0)

    # Layer 3: A @ (h2 @ W3)        -- A contracts against Dout (= 8).
    h2w3 = jnp.dot(h2.astype(cdt), w3_ref[...], preferred_element_type=jnp.float32)
    o_ref[...] = jnp.dot(a, h2w3.astype(cdt),
                         preferred_element_type=jnp.float32).astype(o_ref.dtype)


def _gcn_fused_kernel_identity(a_ref, w1_ref, w2_ref, w3_ref, o_ref):
    """Same as above, but X == I so the (A @ X) matmul is skipped entirely."""
    cdt = a_ref.dtype
    a = a_ref[...]
    h1 = jnp.maximum(
        jnp.dot(a, w1_ref[...], preferred_element_type=jnp.float32), 0.0)
    h1w2 = jnp.dot(h1.astype(cdt), w2_ref[...], preferred_element_type=jnp.float32)
    h2 = jnp.maximum(
        jnp.dot(a, h1w2.astype(cdt), preferred_element_type=jnp.float32), 0.0)
    h2w3 = jnp.dot(h2.astype(cdt), w3_ref[...], preferred_element_type=jnp.float32)
    o_ref[...] = jnp.dot(a, h2w3.astype(cdt),
                         preferred_element_type=jnp.float32).astype(o_ref.dtype)


def gcn_forward_fused(A, X, W1, W2, W3, *, x_is_identity=False,
                      compute_dtype=jnp.bfloat16):
    """Single fused pallas_call. Valid while A + weights + intermediates fit
    in VMEM (roughly a few thousand nodes on v5e/v6e, ~2K on v7x); past that,
    use gcn_forward_tiled below.  W* come in PyTorch [out, in] convention and
    are transposed (and cast to the compute dtype) here in the wrapper."""
    n = A.shape[0]
    dout = W3.shape[0]
    cdt = compute_dtype

    A_c = A.astype(cdt)
    W1t = W1.T.astype(cdt)
    W2t = W2.T.astype(cdt)
    W3t = W3.T.astype(cdt)

    if x_is_identity:
        kernel = _gcn_fused_kernel_identity
        operands = (A_c, W1t, W2t, W3t)
    else:
        kernel = _gcn_fused_kernel
        operands = (A_c, X.astype(cdt), W1t, W2t, W3t)

    full = lambda shape: pl.BlockSpec(shape, lambda: (0,) * len(shape))
    # Note: Dout=8 means the final store is a masked vst on 8/128 lanes; this
    # is unavoidable for a single graph.  Batch multiple graphs along the last
    # dim to make the output lane-dense.
    return pl.pallas_call(
        kernel,
        out_shape=jax.ShapeDtypeStruct((n, dout), jnp.float32),
        in_specs=[full(op.shape) for op in operands],
        out_specs=full((n, dout)),
        compiler_params=pltpu.CompilerParams(
            vmem_limit_bytes=32 * 1024 * 1024),
    )(*operands)


# ---------------------------------------------------------------------------
# Path 2: row-tiled per-layer GCN (scales past VMEM limits)
# ---------------------------------------------------------------------------
def _matmul_act_kernel(a_ref, b_ref, o_ref, acc_ref, *, apply_relu):
    """One (row-tile, K-tile) step of O = act(A @ B) with f32 accumulation."""
    @pl.when(pl.program_id(1) == 0)
    def _():
        acc_ref[...] = jnp.zeros_like(acc_ref)

    acc_ref[...] += jnp.dot(a_ref[...], b_ref[...],
                            preferred_element_type=jnp.float32)

    @pl.when(pl.program_id(1) == pl.num_programs(1) - 1)
    def _():
        r = acc_ref[...]
        if apply_relu:
            r = jnp.maximum(r, 0.0)
        o_ref[...] = r.astype(o_ref.dtype)


def matmul_act(a, b, *, relu=False, out_dtype=jnp.float32, tm=512, tk=512):
    """act(a @ b), row-tiled over `a` rows with a K-reduction grid axis."""
    m, k = a.shape
    k2, n_out = b.shape
    assert k == k2, (a.shape, b.shape)
    tm = min(tm, m)
    tk = min(tk, k)
    assert m % tm == 0 and k % tk == 0, "choose tile sizes dividing the shapes"
    grid = (m // tm, k // tk)
    return pl.pallas_call(
        functools.partial(_matmul_act_kernel, apply_relu=relu),
        out_shape=jax.ShapeDtypeStruct((m, n_out), out_dtype),
        grid=grid,
        in_specs=[
            pl.BlockSpec((tm, tk), lambda i, kk: (i, kk)),
            pl.BlockSpec((tk, n_out), lambda i, kk: (kk, 0)),
        ],
        out_specs=pl.BlockSpec((tm, n_out), lambda i, kk: (i, 0)),
        scratch_shapes=[pltpu.VMEM((tm, n_out), jnp.float32)],
        compiler_params=pltpu.CompilerParams(
            dimension_semantics=("parallel", "arbitrary"),
            vmem_limit_bytes=32 * 1024 * 1024),
    )(a, b)


def gcn_forward_tiled(A, X, W1, W2, W3, *, x_is_identity=False,
                      compute_dtype=jnp.bfloat16, tm=512, tk=512):
    """Per-layer row-tiled GCN: same reassociation (A contracts against the
    narrow dims) but A never has to be fully VMEM-resident."""
    cdt = compute_dtype
    A_c = A.astype(cdt)
    W1t = W1.T.astype(cdt)
    W2t = W2.T.astype(cdt)
    W3t = W3.T.astype(cdt)

    mm = functools.partial(matmul_act, tm=tm, tk=tk)

    # Layer 1: h1 = relu((A @ X) @ W1);  A @ X == A when X is the identity.
    ax = A_c if x_is_identity else mm(A_c, X.astype(cdt), out_dtype=cdt)
    h1 = mm(ax, W1t, relu=True, out_dtype=cdt)

    # Layer 2: h2 = relu(A @ (h1 @ W2))   (reassociated)
    h1w2 = mm(h1, W2t, out_dtype=cdt)
    h2 = mm(A_c, h1w2, relu=True, out_dtype=cdt)

    # Layer 3: out = A @ (h2 @ W3)        (reassociated)
    h2w3 = mm(h2, W3t, out_dtype=cdt)
    return mm(A_c, h2w3, out_dtype=jnp.float32)


# ---------------------------------------------------------------------------
# Reference + demo
# ---------------------------------------------------------------------------
def reference_forward(A, X, W1, W2, W3):
    h1 = jax.nn.relu((A @ X) @ W1.T)
    h2 = jax.nn.relu((A @ h1) @ W2.T)
    return (A @ h2) @ W3.T


def _make_inputs(key, n, dim_out):
    # TODO(synk): the original script builds A from the networkx karate-club
    # graph; replaced with a deterministic synthetic symmetric 0/1 adjacency.
    k_a, k_w1, k_w2, k_w3 = jax.random.split(key, 4)
    rnd = jax.random.uniform(k_a, (n, n))
    A = (rnd + rnd.T > 1.0).astype(jnp.float32)
    A = jnp.clip(A + jnp.eye(n, dtype=jnp.float32), 0.0, 1.0)
    X = jnp.eye(n, dtype=jnp.float32)          # one-hot node features
    dh = n // 2
    W1 = jax.random.normal(k_w1, (n, n), jnp.float32) / jnp.sqrt(n)
    W2 = jax.random.normal(k_w2, (dh, n), jnp.float32) / jnp.sqrt(n)
    W3 = jax.random.normal(k_w3, (dim_out, dh), jnp.float32) / jnp.sqrt(dh)
    return A, X, W1, W2, W3


def _check(name, out, ref, tol):
    out = jax.block_until_ready(out)
    assert out.shape == ref.shape, (name, out.shape, ref.shape)
    rel = float(jnp.max(jnp.abs(out - ref)) / (jnp.max(jnp.abs(ref)) + 1e-6))
    assert rel < tol, (name, rel)


if __name__ == "__main__":
    key = jax.random.PRNGKey(0)

    # ---- small graph (karate-club scale), fused single-kernel path --------
    N_SMALL, DOUT = 32, 8
    A, X, W1, W2, W3 = _make_inputs(key, N_SMALL, DOUT)
    ref = reference_forward(A, X, W1, W2, W3)

    # f32 compute, identity-X fast path: only rounding diffs vs reference.
    out = gcn_forward_fused(A, X, W1, W2, W3, x_is_identity=True,
                            compute_dtype=jnp.float32)
    _check("fused_f32_identity", out, ref, 1e-3)

    # general (non-identity) X code path, f32.
    out = gcn_forward_fused(A, X, W1, W2, W3, x_is_identity=False,
                            compute_dtype=jnp.float32)
    _check("fused_f32_general", out, ref, 1e-3)

    # bf16 MXU inputs + f32 accumulation (recommended production config).
    out = gcn_forward_fused(A, X, W1, W2, W3, x_is_identity=True,
                            compute_dtype=jnp.bfloat16)
    _check("fused_bf16_identity", out, ref, 1e-1)

    # ---- larger graph, row-tiled per-layer path (scalable variant) --------
    N_BIG = 256
    Ab, Xb, W1b, W2b, W3b = _make_inputs(jax.random.PRNGKey(0), N_BIG, DOUT)
    refb = reference_forward(Ab, Xb, W1b, W2b, W3b)

    outb = gcn_forward_tiled(Ab, Xb, W1b, W2b, W3b, x_is_identity=True,
                             compute_dtype=jnp.float32, tm=128, tk=128)
    _check("tiled_f32_identity", outb, refb, 1e-3)

    outb = gcn_forward_tiled(Ab, Xb, W1b, W2b, W3b, x_is_identity=False,
                             compute_dtype=jnp.bfloat16, tm=128, tk=128)
    _check("tiled_bf16_general", outb, refb, 1e-1)

    print("KERNEL_OK")
</pallas_src>

<mosaic_0001>
module attributes {stable_mosaic.version = 11 : i64} {
  func.func @_gcn_fused_kernel_identity(%arg0: memref<32x32xf32, #tpu.memory_space<vmem>>, %arg1: memref<32x32xf32, #tpu.memory_space<vmem>>, %arg2: memref<32x16xf32, #tpu.memory_space<vmem>>, %arg3: memref<16x8xf32, #tpu.memory_space<vmem>>, %arg4: memref<32x8xf32, #tpu.memory_space<vmem>>) attributes {dimension_semantics = [], scalar_prefetch = 0 : i64, scratch_operands = 0 : i64, tpu.core_type = #tpu.core_type<tc>} {
    %c0 = arith.constant 0 : index
    %c0_0 = arith.constant 0 : index
    %0 = vector.load %arg0[%c0, %c0_0] : memref<32x32xf32, #tpu.memory_space<vmem>>, vector<32x32xf32>
    %c0_1 = arith.constant 0 : index
    %c0_2 = arith.constant 0 : index
    %1 = vector.load %arg1[%c0_1, %c0_2] : memref<32x32xf32, #tpu.memory_space<vmem>>, vector<32x32xf32>
    %cst = arith.constant dense<0.000000e+00> : vector<32x32xf32>
    %2 = tpu.matmul %0, %1, %cst {dimension_numbers = #tpu.dot_dimension_numbers<[1], [0], [0], [1], [0, 0, 1, 1], [], []>} : vector<32x32xf32>, vector<32x32xf32>, vector<32x32xf32> -> vector<32x32xf32>
    %cst_3 = arith.constant 0.000000e+00 : f32
    %3 = vector.broadcast %cst_3 : f32 to vector<32x32xf32>
    %4 = arith.maximumf %2, %3 : vector<32x32xf32>
    %c0_4 = arith.constant 0 : index
    %c0_5 = arith.constant 0 : index
    %5 = vector.load %arg2[%c0_4, %c0_5] : memref<32x16xf32, #tpu.memory_space<vmem>>, vector<32x16xf32>
    %cst_6 = arith.constant dense<0.000000e+00> : vector<32x16xf32>
    %6 = tpu.matmul %4, %5, %cst_6 {dimension_numbers = #tpu.dot_dimension_numbers<[1], [0], [0], [1], [0, 0, 1, 1], [], []>} : vector<32x32xf32>, vector<32x16xf32>, vector<32x16xf32> -> vector<32x16xf32>
    %cst_7 = arith.constant dense<0.000000e+00> : vector<32x16xf32>
    %7 = tpu.matmul %0, %6, %cst_7 {dimension_numbers = #tpu.dot_dimension_numbers<[1], [0], [0], [1], [0, 0, 1, 1], [], []>} : vector<32x32xf32>, vector<32x16xf32>, vector<32x16xf32> -> vector<32x16xf32>
    %cst_8 = arith.constant 0.000000e+00 : f32
    %8 = vector.broadcast %cst_8 : f32 to vector<32x16xf32>
    %9 = arith.maximumf %7, %8 : vector<32x16xf32>
    %c0_9 = arith.constant 0 : index
    %c0_10 = arith.constant 0 : index
    %10 = vector.load %arg3[%c0_9, %c0_10] : memref<16x8xf32, #tpu.memory_space<vmem>>, vector<16x8xf32>
    %cst_11 = arith.constant dense<0.000000e+00> : vector<32x8xf32>
    %11 = tpu.matmul %9, %10, %cst_11 {dimension_numbers = #tpu.dot_dimension_numbers<[1], [0], [0], [1], [0, 0, 1, 1], [], []>} : vector<32x16xf32>, vector<16x8xf32>, vector<32x8xf32> -> vector<32x8xf32>
    %cst_12 = arith.constant dense<0.000000e+00> : vector<32x8xf32>
    %12 = tpu.matmul %0, %11, %cst_12 {dimension_numbers = #tpu.dot_dimension_numbers<[1], [0], [0], [1], [0, 0, 1, 1], [], []>} : vector<32x32xf32>, vector<32x8xf32>, vector<32x8xf32> -> vector<32x8xf32>
    %c0_13 = arith.constant 0 : index
    %c0_14 = arith.constant 0 : index
    %13 = vector.load %arg4[%c0_13, %c0_14] : memref<32x8xf32, #tpu.memory_space<vmem>>, vector<32x8xf32>
    tpu.vector_store %arg4[%c0_13, %c0_14], %12 {strides = array<i32>} : memref<32x8xf32, #tpu.memory_space<vmem>>, vector<32x8xf32>,
    return
  }
}

</mosaic_0001>

<llo_original>
// kernel: tpu_custom_call.1
$region0: #{tpu_custom_call.1}
  #allocation0 [shape = 'u32[]', space=smem, size = 0x4, offset = 0x4, fixed_abs, tag = 'smem constant byte address 0x4 - core index']
  #allocation1 [shape = 'u32[144,128]{1,0:T(1,128)}', space=vmem, size = 0x12000, scoped, tag = 'internal scratch']
  %s0 = inlined_call_operand.vmem [shape: f32[32,32], index: 0, kind: input, shape index: {}]
  %s1 = inlined_call_operand.vmem [shape: f32[32,32], index: 1, kind: input, shape index: {}]
  %s2 = inlined_call_operand.vmem [shape: f32[32,16], index: 2, kind: input, shape index: {}]
  %s3 = inlined_call_operand.vmem [shape: f32[16,8], index: 3, kind: input, shape index: {}]
  %s4 = inlined_call_operand.vmem [shape: f32[32,8], index: 4, kind: output, shape index: {}]
  %s5 = sld [smem:[#allocation0]]
  $region26: #{tpu_custom_call.1} parent=0
    _
  %s7 = ssub.s32 1, %s5
  %s8 = scalar_select 0, %s7, %s5
  // Predicated region
  $region2: #{tpu_custom_call.1} parent=0 // pred_check
    _
  $region3: #{tpu_custom_call.1} parent=0 // pred_check_branch
    %10 = sbr.rel (0) target = $region5
  $region4: #{tpu_custom_call.1} parent=0 // pred_region
    _
  $region5: #{tpu_custom_call.1} parent=0 // pred_fallthru
    _
  // Predicated region
  $region6: #{tpu_custom_call.1} parent=0 // pred_check
    _
  $region7: #{tpu_custom_call.1} parent=0 // pred_check_branch
    %12 = sbr.rel (0) target = $region9
  $region8: #{tpu_custom_call.1} parent=0 // pred_region
    _
  $region9: #{tpu_custom_call.1} parent=0 // pred_fallthru
    _
  // Predicated region
  $region10: #{tpu_custom_call.1} parent=0 // pred_check
    _
  $region11: #{tpu_custom_call.1} parent=0 // pred_check_branch
    %14 = sbr.rel (0) target = $region13
  $region12: #{tpu_custom_call.1} parent=0 // pred_region
    _
  $region13: #{tpu_custom_call.1} parent=0 // pred_fallthru
    _
  // Predicated region
  $region14: #{tpu_custom_call.1} parent=0 // pred_check
    _
  $region15: #{tpu_custom_call.1} parent=0 // pred_check_branch
    %16 = sbr.rel (0) target = $region17
  $region16: #{tpu_custom_call.1} parent=0 // pred_region
    _
  $region17: #{tpu_custom_call.1} parent=0 // pred_fallthru
    _
  %v17 = vld [vmem:[%s0] sm:$0xff]
  %v18 = vld [vmem:[%s0 + $0x8] sm:$0xff]
  %v19 = vld [vmem:[%s0 + $0x10] sm:$0xff]
  %v20 = vld [vmem:[%s0 + $0x18] sm:$0xff]
  %v21 = vld [vmem:[%s1] sm:$0xff]
  %v22 = vld [vmem:[%s1 + $0x8] sm:$0xff]
  %v23 = vld [vmem:[%s1 + $0x10] sm:$0xff]
  %v24 = vld [vmem:[%s1 + $0x18] sm:$0xff]
  %vm25 = vcmask 261120
  %v27 = vsel %vm25, %v17, 0
  %v30 = vsel %vm25, %v18, 0
  %v33 = vsel %vm25, %v19, 0
  %v36 = vsel %vm25, %v20, 0
  %38 = vmatprep.subr.mxu0 0.0
  %39 = vmatpush1.msra.mxu0 0.0
  %40 = vmatprep.subr.mxu0 0.0
  %41 = vmatpush1.msra.mxu0 0.0
  %42 = vmatprep.subr.mxu0 0.0
  %43 = vmatpush1.msra.mxu0 0.0
  %44 = vmatprep.subr.mxu0 0.0
  %45 = vmatpush1.msra.mxu0 0.0
  %46 = vmatprep.subr.mxu0 0.0
  %47 = vmatpush1.msra.mxu0 0.0
  %48 = vmatprep.subr.mxu0 0.0
  %49 = vmatpush1.msra.mxu0 0.0
  %50 = vmatprep.subr.mxu0 0.0
  %51 = vmatpush1.msra.mxu0 0.0
  %52 = vmatprep.subr.mxu0 0.0
  %53 = vmatpush1.msra.mxu0 0.0
  %54 = vmatprep.subr.mxu0 0.0
  %55 = vmatpush1.msra.mxu0 0.0
  %56 = vmatprep.subr.mxu0 0.0
  %57 = vmatpush1.msra.mxu0 0.0
  %58 = vmatprep.subr.mxu0 0.0
  %59 = vmatpush1.msra.mxu0 0.0
  %60 = vmatprep.subr.mxu0 0.0
  %61 = vmatpush1.msra.mxu0 0.0
  %62 = vmatprep.subr.mxu0 0.0
  %63 = vmatpush1.msra.mxu0 %v24
  %64 = vmatprep.subr.mxu0 0.0
  %65 = vmatpush1.msra.mxu0 %v23
  %66 = vmatprep.subr.mxu0 0.0
  %67 = vmatpush1.msra.mxu0 %v22
  %68 = vmatprep.subr.mxu0 0.0
  %69 = vmatpush1.msra.mxu0 %v21
  %70 = vmatprep.subr.mxu0 0.0
  %71 = vmatpush2.msra.mxu0 0.0
  %72 = vmatprep.subr.mxu0 0.0
  %73 = vmatpush2.msra.mxu0 0.0
  %74 = vmatprep.subr.mxu0 0.0
  %75 = vmatpush2.msra.mxu0 0.0
  %76 = vmatprep.subr.mxu0 0.0
  %77 = vmatpush2.msra.mxu0 0.0
  %78 = vmatprep.subr.mxu0 0.0
  %79 = vmatpush2.msra.mxu0 0.0
  %80 = vmatprep.subr.mxu0 0.0
  %81 = vmatpush2.msra.mxu0 0.0
  %82 = vmatprep.subr.mxu0 0.0
  %83 = vmatpush2.msra.mxu0 0.0
  %84 = vmatprep.subr.mxu0 0.0
  %85 = vmatpush2.msra.mxu0 0.0
  %86 = vmatprep.subr.mxu0 0.0
  %87 = vmatpush2.msra.mxu0 0.0
  %88 = vmatprep.subr.mxu0 0.0
  %89 = vmatpush2.msra.mxu0 0.0
  %90 = vmatprep.subr.mxu0 0.0
  %91 = vmatpush2.msra.mxu0 0.0
  %92 = vmatprep.subr.mxu0 0.0
  %93 = vmatpush2.msra.mxu0 0.0
  %94 = vmatprep.subr.mxu0 0.0
  %95 = vmatpush2.msra.mxu0 0.0
  %96 = vmatprep.subr.mxu0 0.0
  %97 = vmatpush2.msra.mxu0 0.0
  %98 = vmatprep.subr.mxu0 0.0
  %99 = vmatpush2.msra.mxu0 0.0
  %100 = vmatprep.subr.mxu0 0.0
  %101 = vmatpush2.msra.mxu0 0.0
  %102 = vmatprep.mubr.f32.mxu0 0.0
  %103 = vmatmul.mubr.f32.gmra.mxu0 %v27
  %v104 = vpop.f32.mrf.mxu0
  %v105 = vadd.f32 0.0, %v104
  %v106 = vpop.f32.mrf.mxu0
  %107 = vmatprep.mubr.f32.mxu0 0.0
  %108 = vmatmul.mubr.f32.gmra.mxu0 %v30
  %v109 = vpop.f32.mrf.mxu0
  %v110 = vadd.f32 0.0, %v109
  %v111 = vpop.f32.mrf.mxu0
  %112 = vmatprep.mubr.f32.mxu0 0.0
  %113 = vmatmul.mubr.f32.gmra.mxu0 %v33
  %v114 = vpop.f32.mrf.mxu0
  %v115 = vadd.f32 0.0, %v114
  %v116 = vpop.f32.mrf.mxu0
  %117 = vmatprep.mubr.f32.mxu0 0.0
  %118 = vmatmul.mubr.f32.gmra.mxu0 %v36
  %v119 = vpop.f32.mrf.mxu0
  %v120 = vadd.f32 0.0, %v119
  %v121 = vpop.f32.mrf.mxu0
  %122 = vdwg.mxu0
  %v123 = vmax.f32 %v105, 0.0
  %v124 = vmax.f32 %v110, 0.0
  %v125 = vmax.f32 %v115, 0.0
  %v126 = vmax.f32 %v120, 0.0
  %v127 = vld [vmem:[%s2] sm:$0xff]
  %v128 = vld [vmem:[%s2 + $0x8] sm:$0xff]
  %v129 = vld [vmem:[%s2 + $0x10] sm:$0xff]
  %v130 = vld [vmem:[%s2 + $0x18] sm:$0xff]
  %v132 = vsel %vm25, %v123, 0
  %v135 = vsel %vm25, %v124, 0
  %v138 = vsel %vm25, %v125, 0
  %v141 = vsel %vm25, %v126, 0
  %143 = vmatprep.subr.mxu0 0.0
  %144 = vmatpush1.msra.mxu0 0.0
  %145 = vmatprep.subr.mxu0 0.0
  %146 = vmatpush1.msra.mxu0 0.0
  %147 = vmatprep.subr.mxu0 0.0
  %148 = vmatpush1.msra.mxu0 0.0
  %149 = vmatprep.subr.mxu0 0.0
  %150 = vmatpush1.msra.mxu0 0.0
  %151 = vmatprep.subr.mxu0 0.0
  %152 = vmatpush1.msra.mxu0 0.0
  %153 = vmatprep.subr.mxu0 0.0
  %154 = vmatpush1.msra.mxu0 0.0
  %155 = vmatprep.subr.mxu0 0.0
  %156 = vmatpush1.msra.mxu0 0.0
  %157 = vmatprep.subr.mxu0 0.0
  %158 = vmatpush1.msra.mxu0 0.0
  %159 = vmatprep.subr.mxu0 0.0
  %160 = vmatpush1.msra.mxu0 0.0
  %161 = vmatprep.subr.mxu0 0.0
  %162 = vmatpush1.msra.mxu0 0.0
  %163 = vmatprep.subr.mxu0 0.0
  %164 = vmatpush1.msra.mxu0 0.0
  %165 = vmatprep.subr.mxu0 0.0
  %166 = vmatpush1.msra.mxu0 0.0
  %167 = vmatprep.subr.mxu0 0.0
  %168 = vmatpush1.msra.mxu0 %v130
  %169 = vmatprep.subr.mxu0 0.0
  %170 = vmatpush1.msra.mxu0 %v129
  %171 = vmatprep.subr.mxu0 0.0
  %172 = vmatpush1.msra.mxu0 %v128
  %173 = vmatprep.subr.mxu0 0.0
  %174 = vmatpush1.msra.mxu0 %v127
  %175 = vmatprep.subr.mxu0 0.0
  %176 = vmatpush2.msra.mxu0 0.0
  %177 = vmatprep.subr.mxu0 0.0
  %178 = vmatpush2.msra.mxu0 0.0
  %179 = vmatprep.subr.mxu0 0.0
  %180 = vmatpush2.msra.mxu0 0.0
  %181 = vmatprep.subr.mxu0 0.0
  %182 = vmatpush2.msra.mxu0 0.0
  %183 = vmatprep.subr.mxu0 0.0
  %184 = vmatpush2.msra.mxu0 0.0
  %185 = vmatprep.subr.mxu0 0.0
  %186 = vmatpush2.msra.mxu0 0.0
  %187 = vmatprep.subr.mxu0 0.0
  %188 = vmatpush2.msra.mxu0 0.0
  %189 = vmatprep.subr.mxu0 0.0
  %190 = vmatpush2.msra.mxu0 0.0
  %191 = vmatprep.subr.mxu0 0.0
  %192 = vmatpush2.msra.mxu0 0.0
  %193 = vmatprep.subr.mxu0 0.0
  %194 = vmatpush2.msra.mxu0 0.0
  %195 = vmatprep.subr.mxu0 0.0
  %196 = vmatpush2.msra.mxu0 0.0
  %197 = vmatprep.subr.mxu0 0.0
  %198 = vmatpush2.msra.mxu0 0.0
  %199 = vmatprep.subr.mxu0 0.0
  %200 = vmatpush2.msra.mxu0 0.0
  %201 = vmatprep.subr.mxu0 0.0
  %202 = vmatpush2.msra.mxu0 0.0
  %203 = vmatprep.subr.mxu0 0.0
  %204 = vmatpush2.msra.mxu0 0.0
  %205 = vmatprep.subr.mxu0 0.0
  %206 = vmatpush2.msra.mxu0 0.0
  %207 = vmatprep.mubr.f32.mxu0 0.0
  %208 = vmatmul.mubr.f32.gmra.mxu0 %v132
  %v209 = vpop.f32.mrf.mxu0
  %v210 = vadd.f32 0.0, %v209
  %v211 = vpop.f32.mrf.mxu0
  %212 = vmatprep.mubr.f32.mxu0 0.0
  %213 = vmatmul.mubr.f32.gmra.mxu0 %v135
  %v214 = vpop.f32.mrf.mxu0
  %v215 = vadd.f32 0.0, %v214
  %v216 = vpop.f32.mrf.mxu0
  %217 = vmatprep.mubr.f32.mxu0 0.0
  %218 = vmatmul.mubr.f32.gmra.mxu0 %v138
  %v219 = vpop.f32.mrf.mxu0
  %v220 = vadd.f32 0.0, %v219
  %v221 = vpop.f32.mrf.mxu0
  %222 = vmatprep.mubr.f32.mxu0 0.0
  %223 = vmatmul.mubr.f32.gmra.mxu0 %v141
  %v224 = vpop.f32.mrf.mxu0
  %v225 = vadd.f32 0.0, %v224
  %v226 = vpop.f32.mrf.mxu0
  %227 = vdwg.mxu0
  %228 = vmatprep.subr.mxu0 0.0
  %229 = vmatpush1.msra.mxu0 0.0
  %230 = vmatprep.subr.mxu0 0.0
  %231 = vmatpush1.msra.mxu0 0.0
  %232 = vmatprep.subr.mxu0 0.0
  %233 = vmatpush1.msra.mxu0 0.0
  %234 = vmatprep.subr.mxu0 0.0
  %235 = vmatpush1.msra.mxu0 0.0
  %236 = vmatprep.subr.mxu0 0.0
  %237 = vmatpush1.msra.mxu0 0.0
  %238 = vmatprep.subr.mxu0 0.0
  %239 = vmatpush1.msra.mxu0 0.0
  %240 = vmatprep.subr.mxu0 0.0
  %241 = vmatpush1.msra.mxu0 0.0
  %242 = vmatprep.subr.mxu0 0.0
  %243 = vmatpush1.msra.mxu0 0.0
  %244 = vmatprep.subr.mxu0 0.0
  %245 = vmatpush1.msra.mxu0 0.0
  %246 = vmatprep.subr.mxu0 0.0
  %247 = vmatpush1.msra.mxu0 0.0
  %248 = vmatprep.subr.mxu0 0.0
  %249 = vmatpush1.msra.mxu0 0.0
  %250 = vmatprep.subr.mxu0 0.0
  %251 = vmatpush1.msra.mxu0 0.0
  %252 = vmatprep.subr.mxu0 0.0
  %253 = vmatpush1.msra.mxu0 %v225
  %254 = vmatprep.subr.mxu0 0.0
  %255 = vmatpush1.msra.mxu0 %v220
  %256 = vmatprep.subr.mxu0 0.0
  %257 = vmatpush1.msra.mxu0 %v215
  %258 = vmatprep.subr.mxu0 0.0
  %259 = vmatpush1.msra.mxu0 %v210
  %260 = vmatprep.subr.mxu0 0.0
  %261 = vmatpush2.msra.mxu0 0.0
  %262 = vmatprep.subr.mxu0 0.0
  %263 = vmatpush2.msra.mxu0 0.0
  %264 = vmatprep.subr.mxu0 0.0
  %265 = vmatpush2.msra.mxu0 0.0
  %266 = vmatprep.subr.mxu0 0.0
  %267 = vmatpush2.msra.mxu0 0.0
  %268 = vmatprep.subr.mxu0 0.0
  %269 = vmatpush2.msra.mxu0 0.0
  %270 = vmatprep.subr.mxu0 0.0
  %271 = vmatpush2.msra.mxu0 0.0
  %272 = vmatprep.subr.mxu0 0.0
  %273 = vmatpush2.msra.mxu0 0.0
  %274 = vmatprep.subr.mxu0 0.0
  %275 = vmatpush2.msra.mxu0 0.0
  %276 = vmatprep.subr.mxu0 0.0
  %277 = vmatpush2.msra.mxu0 0.0
  %278 = vmatprep.subr.mxu0 0.0
  %279 = vmatpush2.msra.mxu0 0.0
  %280 = vmatprep.subr.mxu0 0.0
  %281 = vmatpush2.msra.mxu0 0.0
  %282 = vmatprep.subr.mxu0 0.0
  %283 = vmatpush2.msra.mxu0 0.0
  %284 = vmatprep.subr.mxu0 0.0
  %285 = vmatpush2.msra.mxu0 0.0
  %286 = vmatprep.subr.mxu0 0.0
  %287 = vmatpush2.msra.mxu0 0.0
  %288 = vmatprep.subr.mxu0 0.0
  %289 = vmatpush2.msra.mxu0 0.0
  %290 = vmatprep.subr.mxu0 0.0
  %291 = vmatpush2.msra.mxu0 0.0
  %292 = vmatprep.mubr.f32.mxu0 0.0
  %293 = vmatmul.mubr.f32.gmra.mxu0 %v27
  %v294 = vpop.f32.mrf.mxu0
  %v295 = vadd.f32 0.0, %v294
  %v296 = vpop.f32.mrf.mxu0
  %297 = vmatprep.mubr.f32.mxu0 0.0
  %298 = vmatmul.mubr.f32.gmra.mxu0 %v30
  %v299 = vpop.f32.mrf.mxu0
  %v300 = vadd.f32 0.0, %v299
  %v301 = vpop.f32.mrf.mxu0
  %302 = vmatprep.mubr.f32.mxu0 0.0
  %303 = vmatmul.mubr.f32.gmra.mxu0 %v33
  %v304 = vpop.f32.mrf.mxu0
  %v305 = vadd.f32 0.0, %v304
  %v306 = vpop.f32.mrf.mxu0
  %307 = vmatprep.mubr.f32.mxu0 0.0
  %308 = vmatmul.mubr.f32.gmra.mxu0 %v36
  %v309 = vpop.f32.mrf.mxu0
  %v310 = vadd.f32 0.0, %v309
  %v311 = vpop.f32.mrf.mxu0
  %312 = vdwg.mxu0
  %v313 = vmax.f32 %v295, 0.0
  %v314 = vmax.f32 %v300, 0.0
  %v315 = vmax.f32 %v305, 0.0
  %v316 = vmax.f32 %v310, 0.0
  %v317 = vld [vmem:[%s3] sm:$0xff]
  %v318 = vld [vmem:[%s3 + $0x8] sm:$0xff]
  %vm319 = vcmask 130048
  %v321 = vsel %vm319, %v313, 0
  %v324 = vsel %vm319, %v314, 0
  %v327 = vsel %vm319, %v315, 0
  %v330 = vsel %vm319, %v316, 0
  %332 = vmatprep.subr.mxu0 0.0
  %333 = vmatpush1.msra.mxu0 0.0
  %334 = vmatprep.subr.mxu0 0.0
  %335 = vmatpush1.msra.mxu0 0.0
  %336 = vmatprep.subr.mxu0 0.0
  %337 = vmatpush1.msra.mxu0 0.0
  %338 = vmatprep.subr.mxu0 0.0
  %339 = vmatpush1.msra.mxu0 0.0
  %340 = vmatprep.subr.mxu0 0.0
  %341 = vmatpush1.msra.mxu0 0.0
  %342 = vmatprep.subr.mxu0 0.0
  %343 = vmatpush1.msra.mxu0 0.0
  %344 = vmatprep.subr.mxu0 0.0
  %345 = vmatpush1.msra.mxu0 0.0
  %346 = vmatprep.subr.mxu0 0.0
  %347 = vmatpush1.msra.mxu0 0.0
  %348 = vmatprep.subr.mxu0 0.0
  %349 = vmatpush1.msra.mxu0 0.0
  %350 = vmatprep.subr.mxu0 0.0
  %351 = vmatpush1.msra.mxu0 0.0
  %352 = vmatprep.subr.mxu0 0.0
  %353 = vmatpush1.msra.mxu0 0.0
  %354 = vmatprep.subr.mxu0 0.0
  %355 = vmatpush1.msra.mxu0 0.0
  %356 = vmatprep.subr.mxu0 0.0
  %357 = vmatpush1.msra.mxu0 0.0
  %358 = vmatprep.subr.mxu0 0.0
  %359 = vmatpush1.msra.mxu0 0.0
  %360 = vmatprep.subr.mxu0 0.0
  %361 = vmatpush1.msra.mxu0 %v318
  %362 = vmatprep.subr.mxu0 0.0
  %363 = vmatpush1.msra.mxu0 %v317
  %364 = vmatprep.subr.mxu0 0.0
  %365 = vmatpush2.msra.mxu0 0.0
  %366 = vmatprep.subr.mxu0 0.0
  %367 = vmatpush2.msra.mxu0 0.0
  %368 = vmatprep.subr.mxu0 0.0
  %369 = vmatpush2.msra.mxu0 0.0
  %370 = vmatprep.subr.mxu0 0.0
  %371 = vmatpush2.msra.mxu0 0.0
  %372 = vmatprep.subr.mxu0 0.0
  %373 = vmatpush2.msra.mxu0 0.0
  %374 = vmatprep.subr.mxu0 0.0
  %375 = vmatpush2.msra.mxu0 0.0
  %376 = vmatprep.subr.mxu0 0.0
  %377 = vmatpush2.msra.mxu0 0.0
  %378 = vmatprep.subr.mxu0 0.0
  %379 = vmatpush2.msra.mxu0 0.0
  %380 = vmatprep.subr.mxu0 0.0
  %381 = vmatpush2.msra.mxu0 0.0
  %382 = vmatprep.subr.mxu0 0.0
  %383 = vmatpush2.msra.mxu0 0.0
  %384 = vmatprep.subr.mxu0 0.0
  %385 = vmatpush2.msra.mxu0 0.0
  %386 = vmatprep.subr.mxu0 0.0
  %387 = vmatpush2.msra.mxu0 0.0
  %388 = vmatprep.subr.mxu0 0.0
  %389 = vmatpush2.msra.mxu0 0.0
  %390 = vmatprep.subr.mxu0 0.0
  %391 = vmatpush2.msra.mxu0 0.0
  %392 = vmatprep.subr.mxu0 0.0
  %393 = vmatpush2.msra.mxu0 0.0
  %394 = vmatprep.subr.mxu0 0.0
  %395 = vmatpush2.msra.mxu0 0.0
  %396 = vmatprep.mubr.f32.mxu0 0.0
  %397 = vmatmul.mubr.f32.gmra.mxu0 %v321
  %v398 = vpop.f32.mrf.mxu0
  %v399 = vadd.f32 0.0, %v398
  %v400 = vpop.f32.mrf.mxu0
  %401 = vmatprep.mubr.f32.mxu0 0.0
  %402 = vmatmul.mubr.f32.gmra.mxu0 %v324
  %v403 = vpop.f32.mrf.mxu0
  %v404 = vadd.f32 0.0, %v403
  %v405 = vpop.f32.mrf.mxu0
  %406 = vmatprep.mubr.f32.mxu0 0.0
  %407 = vmatmul.mubr.f32.gmra.mxu0 %v327
  %v408 = vpop.f32.mrf.mxu0
  %v409 = vadd.f32 0.0, %v408
  %v410 = vpop.f32.mrf.mxu0
  %411 = vmatprep.mubr.f32.mxu0 0.0
  %412 = vmatmul.mubr.f32.gmra.mxu0 %v330
  %v413 = vpop.f32.mrf.mxu0
  %v414 = vadd.f32 0.0, %v413
  %v415 = vpop.f32.mrf.mxu0
  %416 = vdwg.mxu0
  %417 = vmatprep.subr.mxu0 0.0
  %418 = vmatpush1.msra.mxu0 0.0
  %419 = vmatprep.subr.mxu0 0.0
  %420 = vmatpush1.msra.mxu0 0.0
  %421 = vmatprep.subr.mxu0 0.0
  %422 = vmatpush1.msra.mxu0 0.0
  %423 = vmatprep.subr.mxu0 0.0
  %424 = vmatpush1.msra.mxu0 0.0
  %425 = vmatprep.subr.mxu0 0.0
  %426 = vmatpush1.msra.mxu0 0.0
  %427 = vmatprep.subr.mxu0 0.0
  %428 = vmatpush1.msra.mxu0 0.0
  %429 = vmatprep.subr.mxu0 0.0
  %430 = vmatpush1.msra.mxu0 0.0
  %431 = vmatprep.subr.mxu0 0.0
  %432 = vmatpush1.msra.mxu0 0.0
  %433 = vmatprep.subr.mxu0 0.0
  %434 = vmatpush1.msra.mxu0 0.0
  %435 = vmatprep.subr.mxu0 0.0
  %436 = vmatpush1.msra.mxu0 0.0
  %437 = vmatprep.subr.mxu0 0.0
  %438 = vmatpush1.msra.mxu0 0.0
  %439 = vmatprep.subr.mxu0 0.0
  %440 = vmatpush1.msra.mxu0 0.0
  %441 = vmatprep.subr.mxu0 0.0
  %442 = vmatpush1.msra.mxu0 %v414
  %443 = vmatprep.subr.mxu0 0.0
  %444 = vmatpush1.msra.mxu0 %v409
  %445 = vmatprep.subr.mxu0 0.0
  %446 = vmatpush1.msra.mxu0 %v404
  %447 = vmatprep.subr.mxu0 0.0
  %448 = vmatpush1.msra.mxu0 %v399
  %449 = vmatprep.subr.mxu0 0.0
  %450 = vmatpush2.msra.mxu0 0.0
  %451 = vmatprep.subr.mxu0 0.0
  %452 = vmatpush2.msra.mxu0 0.0
  %453 = vmatprep.subr.mxu0 0.0
  %454 = vmatpush2.msra.mxu0 0.0
  %455 = vmatprep.subr.mxu0 0.0
  %456 = vmatpush2.msra.mxu0 0.0
  %457 = vmatprep.subr.mxu0 0.0
  %458 = vmatpush2.msra.mxu0 0.0
  %459 = vmatprep.subr.mxu0 0.0
  %460 = vmatpush2.msra.mxu0 0.0
  %461 = vmatprep.subr.mxu0 0.0
  %462 = vmatpush2.msra.mxu0 0.0
  %463 = vmatprep.subr.mxu0 0.0
  %464 = vmatpush2.msra.mxu0 0.0
  %465 = vmatprep.subr.mxu0 0.0
  %466 = vmatpush2.msra.mxu0 0.0
  %467 = vmatprep.subr.mxu0 0.0
  %468 = vmatpush2.msra.mxu0 0.0
  %469 = vmatprep.subr.mxu0 0.0
  %470 = vmatpush2.msra.mxu0 0.0
  %471 = vmatprep.subr.mxu0 0.0
  %472 = vmatpush2.msra.mxu0 0.0
  %473 = vmatprep.subr.mxu0 0.0
  %474 = vmatpush2.msra.mxu0 0.0
  %475 = vmatprep.subr.mxu0 0.0
  %476 = vmatpush2.msra.mxu0 0.0
  %477 = vmatprep.subr.mxu0 0.0
  %478 = vmatpush2.msra.mxu0 0.0
  %479 = vmatprep.subr.mxu0 0.0
  %480 = vmatpush2.msra.mxu0 0.0
  %481 = vmatprep.mubr.f32.mxu0 0.0
  %482 = vmatmul.mubr.f32.gmra.mxu0 %v27
  %v483 = vpop.f32.mrf.mxu0
  %v484 = vadd.f32 0.0, %v483
  %v485 = vpop.f32.mrf.mxu0
  %486 = vmatprep.mubr.f32.mxu0 0.0
  %487 = vmatmul.mubr.f32.gmra.mxu0 %v30
  %v488 = vpop.f32.mrf.mxu0
  %v489 = vadd.f32 0.0, %v488
  %v490 = vpop.f32.mrf.mxu0
  %491 = vmatprep.mubr.f32.mxu0 0.0
  %492 = vmatmul.mubr.f32.gmra.mxu0 %v33
  %v493 = vpop.f32.mrf.mxu0
  %v494 = vadd.f32 0.0, %v493
  %v495 = vpop.f32.mrf.mxu0
  %496 = vmatprep.mubr.f32.mxu0 0.0
  %497 = vmatmul.mubr.f32.gmra.mxu0 %v36
  %v498 = vpop.f32.mrf.mxu0
  %v499 = vadd.f32 0.0, %v498
  %v500 = vpop.f32.mrf.mxu0
  %501 = vdwg.mxu0
  %vm502 = vcmask 64512
  %503 = vst.msk [vmem:[%s4] sm:$0xff] %vm502, %v484
  %504 = vst.msk [vmem:[%s4 + $0x8] sm:$0xff] %vm502, %v489
  %505 = vst.msk [vmem:[%s4 + $0x10] sm:$0xff] %vm502, %v494
  %506 = vst.msk [vmem:[%s4 + $0x18] sm:$0xff] %vm502, %v499
  // Predicated region
  $region18: #{tpu_custom_call.1} parent=0 // pred_check
    _
  $region19: #{tpu_custom_call.1} parent=0 // pred_check_branch
    %508 = sbr.rel (0) target = $region21
  $region20: #{tpu_custom_call.1} parent=0 // pred_region
    _
  $region21: #{tpu_custom_call.1} parent=0 // pred_fallthru
    _
  // Predicated region
  $region22: #{tpu_custom_call.1} parent=0 // pred_check
    _
  $region23: #{tpu_custom_call.1} parent=0 // pred_check_branch
    %510 = sbr.rel (0) target = $region25
  $region24: #{tpu_custom_call.1} parent=0 // pred_region
    _
  $region25: #{tpu_custom_call.1} parent=0 // pred_fallthru
    _

</llo_original>
